<compile_context>
chip_gen: v7x
topology: tpu7x:2x2x1
jax: 0.10.0
libtpu: 0.0.40
codegen_flags: <defaults>
</compile_context>

<pallas_src>
import jax
import jax.numpy as jnp
from jax import lax
from jax.experimental import pallas as pl
from jax.experimental.pallas import tpu as pltpu


def _disc_kernel(x_ref, w_ref, o_ref):
    """o = x @ W.T in one shot: (B, K) x (C_pad, K) -> (B, C_pad)."""
    o_ref[...] = lax.dot_general(
        x_ref[...],
        w_ref[...],
        dimension_numbers=(((1,), (1,)), ((), ())),  # contract K with K
        preferred_element_type=jnp.float32,
    ).astype(o_ref.dtype)


def discriminator_forward(x, weight, *, reverse=False, eta=0.1):
    """Pallas equivalent of Discriminator.forward.

    x:      (B, inc)           float32
    weight: (num_class, inc)   float32  (native PyTorch nn.Linear layout)
    returns (B, num_class)
    """
    # TODO(synk): grad_reverse only affects the backward pass (gradient * -eta);
    # forward is identity, so `reverse`/`eta` do not change this computation.
    del reverse, eta

    B, K = x.shape
    C, K2 = weight.shape
    assert K == K2, "inc mismatch between x and weight"

    # Lane-dense class dimension: pad C up to a multiple of 128 with zero rows.
    c_pad = max(128, ((C + 127) // 128) * 128)
    w_pad = jnp.zeros((c_pad, K), dtype=weight.dtype).at[:C, :].set(weight)

    out_padded = pl.pallas_call(
        _disc_kernel,
        out_shape=jax.ShapeDtypeStruct((B, c_pad), x.dtype),
        # Single un-gridded invocation: every block is the full array.
        in_specs=[
            pl.BlockSpec((B, K), lambda: (0, 0)),        # x, whole array
            pl.BlockSpec((c_pad, K), lambda: (0, 0)),    # W (native C,K layout)
        ],
        out_specs=pl.BlockSpec((B, c_pad), lambda: (0, 0)),
        compiler_params=pltpu.CompilerParams(
            # Headroom for the (tiny) operands + double buffering.
            vmem_limit_bytes=32 * 1024 * 1024,
        ),
    )(x, w_pad)

    # Drop the zero-padded class columns.
    return out_padded[:, :C]


if __name__ == "__main__":
    # Small shapes consistent with the module (inc scaled down from 4096).
    B, INC, NUM_CLASS = 8, 512, 2

    key = jax.random.PRNGKey(0)
    kx, kw = jax.random.split(key)
    x = jax.random.normal(kx, (B, INC), dtype=jnp.float32)
    # Deterministic synthetic weight (nn.Linear(inc, num_class, bias=False)).
    weight = jax.random.normal(kw, (NUM_CLASS, INC), dtype=jnp.float32) * 0.02

    out = discriminator_forward(x, weight)
    out = jax.block_until_ready(out)

    # Reference check against plain JAX.
    ref = x @ weight.T
    assert out.shape == (B, NUM_CLASS)
    assert jnp.allclose(out, ref, atol=1e-4, rtol=1e-4), "mismatch vs reference"

    print("KERNEL_OK")
</pallas_src>

<mosaic_0001>
module attributes {stable_mosaic.version = 11 : i64} {
  func.func @_disc_kernel(%arg0: memref<8x512xf32, #tpu.memory_space<vmem>>, %arg1: memref<128x512xf32, #tpu.memory_space<vmem>>, %arg2: memref<8x128xf32, #tpu.memory_space<vmem>>) attributes {dimension_semantics = [], scalar_prefetch = 0 : i64, scratch_operands = 0 : i64, tpu.core_type = #tpu.core_type<tc>} {
    %c0 = arith.constant 0 : index
    %c0_0 = arith.constant 0 : index
    %0 = vector.load %arg0[%c0, %c0_0] : memref<8x512xf32, #tpu.memory_space<vmem>>, vector<8x512xf32>
    %c0_1 = arith.constant 0 : index
    %c0_2 = arith.constant 0 : index
    %1 = vector.load %arg1[%c0_1, %c0_2] : memref<128x512xf32, #tpu.memory_space<vmem>>, vector<128x512xf32>
    %cst = arith.constant dense<0.000000e+00> : vector<8x128xf32>
    %2 = tpu.matmul %0, %1, %cst {dimension_numbers = #tpu.dot_dimension_numbers<[1], [1], [0], [0], [0, 0, 1, 0], [], []>} : vector<8x512xf32>, vector<128x512xf32>, vector<8x128xf32> -> vector<8x128xf32>
    %c0_3 = arith.constant 0 : index
    %c0_4 = arith.constant 0 : index
    %3 = vector.load %arg2[%c0_3, %c0_4] : memref<8x128xf32, #tpu.memory_space<vmem>>, vector<8x128xf32>
    tpu.vector_store %arg2[%c0_3, %c0_4], %2 {strides = array<i32>} : memref<8x128xf32, #tpu.memory_space<vmem>>, vector<8x128xf32>,
    return
  }
}

</mosaic_0001>

<llo_original>
// kernel: tpu_custom_call.1
$region0: #{tpu_custom_call.1}
  #allocation0 [shape = 'u32[]', space=smem, size = 0x4, offset = 0x4, fixed_abs, tag = 'smem constant byte address 0x4 - core index']
  #allocation1 [shape = 'u32[144,128]{1,0:T(1,128)}', space=vmem, size = 0x12000, scoped, tag = 'internal scratch']
  %s0 = inlined_call_operand.hbm [shape: f32[8,512], index: 0, kind: input, shape index: {}]
  %s1 = inlined_call_operand.hbm [shape: f32[128,512], index: 1, kind: input, shape index: {}]
  %s2 = inlined_call_operand.hbm [shape: f32[8,128], index: 2, kind: output, shape index: {}]
  %s3 = sld [smem:[#allocation0]]
  $region26: #{tpu_custom_call.1} parent=0
    _
  %s5 = ssub.s32 1, %s3
  %s6 = scalar_select 0, %s5, %s3
  $region1: #{tpu_custom_call.1} parent=0
    #allocation2 [shape = 'u8[16384]{0}', space=vmem, size = 0x4000, scoped, tag = 'input window, operand 0, single buffered']
    #allocation3 [shape = 's32[1]{0}', space=sflag, size = 0x4, scoped, tag = 'scoped memory for tpu_custom_call.1']
    #allocation4 [shape = 's32[1]{0}', space=sflag, size = 0x4, scoped, tag = 'scoped memory for tpu_custom_call.1']
    #allocation5 [shape = 'u8[262144]{0}', space=vmem, size = 0x40000, scoped, tag = 'input window, operand 1, single buffered']
    #allocation6 [shape = 's32[1]{0}', space=sflag, size = 0x4, scoped, tag = 'scoped memory for tpu_custom_call.1']
    #allocation7 [shape = 'u8[4096]{0}', space=vmem, size = 0x1000, scoped, tag = 'output window, operand 0, single buffered']
    %7 = vsyncpa [#allocation3], 0
    %8 = vsyncpa [#allocation6], 0
    %9 = vsyncpa [#allocation4], 0
    // Predicated region
    $region2: #{tpu_custom_call.1} parent=1 // pred_check
      _
    $region3: #{tpu_custom_call.1} parent=1 // pred_check_branch
      %11 = sbr.rel (0) target = $region5
    $region4: #{tpu_custom_call.1} parent=1 // pred_region
      %s13 = ssub.s32 512, 512
      %14 = vsyncadd [#allocation3], %s13
      %s16 = sshll.u32 [#allocation2], 4
      %s17 = int_to_ptr.vmem [resolvable:$true] %s16
      %19 = dma.hbm_to_vmem [thread:$0]  %s0, 512, %s17, [#allocation3]
    $region5: #{tpu_custom_call.1} parent=1 // pred_fallthru
      _
    // Predicated region
    $region6: #{tpu_custom_call.1} parent=1 // pred_check
      _
    $region7: #{tpu_custom_call.1} parent=1 // pred_check_branch
      %21 = sbr.rel (0) target = $region9
    $region8: #{tpu_custom_call.1} parent=1 // pred_region
      %s23 = ssub.s32 8192, 8192
      %24 = vsyncadd [#allocation6], %s23
      %s25 = sshll.u32 [#allocation5], 4
      %s26 = int_to_ptr.vmem [resolvable:$true] %s25
      %31 = dma.hbm_to_vmem [thread:$0]  %s1, 8192, %s26, [#allocation6], 512, 512, 32
    $region9: #{tpu_custom_call.1} parent=1 // pred_fallthru
      _
    // Predicated region
    $region10: #{tpu_custom_call.1} parent=1 // pred_check
      _
    $region11: #{tpu_custom_call.1} parent=1 // pred_check_branch
      %33 = sbr.rel (0) target = $region13
    $region12: #{tpu_custom_call.1} parent=1 // pred_region
      %34 = dma.done [#allocation3], 512
    $region13: #{tpu_custom_call.1} parent=1 // pred_fallthru
      _
    // Predicated region
    $region14: #{tpu_custom_call.1} parent=1 // pred_check
      _
    $region15: #{tpu_custom_call.1} parent=1 // pred_check_branch
      %36 = sbr.rel (0) target = $region17
    $region16: #{tpu_custom_call.1} parent=1 // pred_region
      %37 = dma.done [#allocation6], 8192
    $region17: #{tpu_custom_call.1} parent=1 // pred_fallthru
      _
    %v38 = vld [vmem:[#allocation2] sm:$0xff]
    %v39 = vld [vmem:[#allocation2 + $0x8] sm:$0xff]
    %v40 = vld [vmem:[#allocation2 + $0x10] sm:$0xff]
    %v41 = vld [vmem:[#allocation2 + $0x18] sm:$0xff]
    %v42 = vld [vmem:[#allocation5] sm:$0xff]
    %v43 = vld [vmem:[#allocation5 + $0x8] sm:$0xff]
    %v44 = vld [vmem:[#allocation5 + $0x10] sm:$0xff]
    %v45 = vld [vmem:[#allocation5 + $0x18] sm:$0xff]
    %v46 = vld [vmem:[#allocation5 + $0x20] sm:$0xff]
    %v47 = vld [vmem:[#allocation5 + $0x28] sm:$0xff]
    %v48 = vld [vmem:[#allocation5 + $0x30] sm:$0xff]
    %v49 = vld [vmem:[#allocation5 + $0x38] sm:$0xff]
    %v50 = vld [vmem:[#allocation5 + $0x40] sm:$0xff]
    %v51 = vld [vmem:[#allocation5 + $0x48] sm:$0xff]
    %v52 = vld [vmem:[#allocation5 + $0x50] sm:$0xff]
    %v53 = vld [vmem:[#allocation5 + $0x58] sm:$0xff]
    %v54 = vld [vmem:[#allocation5 + $0x60] sm:$0xff]
    %v55 = vld [vmem:[#allocation5 + $0x68] sm:$0xff]
    %v56 = vld [vmem:[#allocation5 + $0x70] sm:$0xff]
    %v57 = vld [vmem:[#allocation5 + $0x78] sm:$0xff]
    %v58 = vld [vmem:[#allocation5 + $0x80] sm:$0xff]
    %v59 = vld [vmem:[#allocation5 + $0x88] sm:$0xff]
    %v60 = vld [vmem:[#allocation5 + $0x90] sm:$0xff]
    %v61 = vld [vmem:[#allocation5 + $0x98] sm:$0xff]
    %v62 = vld [vmem:[#allocation5 + $0xa0] sm:$0xff]
    %v63 = vld [vmem:[#allocation5 + $0xa8] sm:$0xff]
    %v64 = vld [vmem:[#allocation5 + $0xb0] sm:$0xff]
    %v65 = vld [vmem:[#allocation5 + $0xb8] sm:$0xff]
    %v66 = vld [vmem:[#allocation5 + $0xc0] sm:$0xff]
    %v67 = vld [vmem:[#allocation5 + $0xc8] sm:$0xff]
    %v68 = vld [vmem:[#allocation5 + $0xd0] sm:$0xff]
    %v69 = vld [vmem:[#allocation5 + $0xd8] sm:$0xff]
    %v70 = vld [vmem:[#allocation5 + $0xe0] sm:$0xff]
    %v71 = vld [vmem:[#allocation5 + $0xe8] sm:$0xff]
    %v72 = vld [vmem:[#allocation5 + $0xf0] sm:$0xff]
    %v73 = vld [vmem:[#allocation5 + $0xf8] sm:$0xff]
    %v74 = vld [vmem:[#allocation5 + $0x100] sm:$0xff]
    %v75 = vld [vmem:[#allocation5 + $0x108] sm:$0xff]
    %v76 = vld [vmem:[#allocation5 + $0x110] sm:$0xff]
    %v77 = vld [vmem:[#allocation5 + $0x118] sm:$0xff]
    %v78 = vld [vmem:[#allocation5 + $0x120] sm:$0xff]
    %v79 = vld [vmem:[#allocation5 + $0x128] sm:$0xff]
    %v80 = vld [vmem:[#allocation5 + $0x130] sm:$0xff]
    %v81 = vld [vmem:[#allocation5 + $0x138] sm:$0xff]
    %v82 = vld [vmem:[#allocation5 + $0x140] sm:$0xff]
    %v83 = vld [vmem:[#allocation5 + $0x148] sm:$0xff]
    %v84 = vld [vmem:[#allocation5 + $0x150] sm:$0xff]
    %v85 = vld [vmem:[#allocation5 + $0x158] sm:$0xff]
    %v86 = vld [vmem:[#allocation5 + $0x160] sm:$0xff]
    %v87 = vld [vmem:[#allocation5 + $0x168] sm:$0xff]
    %v88 = vld [vmem:[#allocation5 + $0x170] sm:$0xff]
    %v89 = vld [vmem:[#allocation5 + $0x178] sm:$0xff]
    %v90 = vld [vmem:[#allocation5 + $0x180] sm:$0xff]
    %v91 = vld [vmem:[#allocation5 + $0x188] sm:$0xff]
    %v92 = vld [vmem:[#allocation5 + $0x190] sm:$0xff]
    %v93 = vld [vmem:[#allocation5 + $0x198] sm:$0xff]
    %v94 = vld [vmem:[#allocation5 + $0x1a0] sm:$0xff]
    %v95 = vld [vmem:[#allocation5 + $0x1a8] sm:$0xff]
    %v96 = vld [vmem:[#allocation5 + $0x1b0] sm:$0xff]
    %v97 = vld [vmem:[#allocation5 + $0x1b8] sm:$0xff]
    %v98 = vld [vmem:[#allocation5 + $0x1c0] sm:$0xff]
    %v99 = vld [vmem:[#allocation5 + $0x1c8] sm:$0xff]
    %v100 = vld [vmem:[#allocation5 + $0x1d0] sm:$0xff]
    %v101 = vld [vmem:[#allocation5 + $0x1d8] sm:$0xff]
    %v102 = vld [vmem:[#allocation5 + $0x1e0] sm:$0xff]
    %v103 = vld [vmem:[#allocation5 + $0x1e8] sm:$0xff]
    %v104 = vld [vmem:[#allocation5 + $0x1f0] sm:$0xff]
    %v105 = vld [vmem:[#allocation5 + $0x1f8] sm:$0xff]
    %106 = vmatprep.subr.mxu0 %v43
    %107 = vmatpush1.xpose.msra.mxu0 %v42
    %108 = vmatprep.subr.mxu0 %v47
    %109 = vmatpush1.xpose.msra.mxu0 %v46
    %110 = vmatprep.subr.mxu0 %v51
    %111 = vmatpush1.xpose.msra.mxu0 %v50
    %112 = vmatprep.subr.mxu0 %v55
    %113 = vmatpush1.xpose.msra.mxu0 %v54
    %114 = vmatprep.subr.mxu0 %v59
    %115 = vmatpush1.xpose.msra.mxu0 %v58
    %116 = vmatprep.subr.mxu0 %v63
    %117 = vmatpush1.xpose.msra.mxu0 %v62
    %118 = vmatprep.subr.mxu0 %v67
    %119 = vmatpush1.xpose.msra.mxu0 %v66
    %120 = vmatprep.subr.mxu0 %v71
    %121 = vmatpush1.xpose.msra.mxu0 %v70
    %122 = vmatprep.subr.mxu0 %v75
    %123 = vmatpush1.xpose.msra.mxu0 %v74
    %124 = vmatprep.subr.mxu0 %v79
    %125 = vmatpush1.xpose.msra.mxu0 %v78
    %126 = vmatprep.subr.mxu0 %v83
    %127 = vmatpush1.xpose.msra.mxu0 %v82
    %128 = vmatprep.subr.mxu0 %v87
    %129 = vmatpush1.xpose.msra.mxu0 %v86
    %130 = vmatprep.subr.mxu0 %v91
    %131 = vmatpush1.xpose.msra.mxu0 %v90
    %132 = vmatprep.subr.mxu0 %v95
    %133 = vmatpush1.xpose.msra.mxu0 %v94
    %134 = vmatprep.subr.mxu0 %v99
    %135 = vmatpush1.xpose.msra.mxu0 %v98
    %136 = vmatprep.subr.mxu0 %v103
    %137 = vmatpush1.xpose.msra.mxu0 %v102
    %138 = vmatprep.subr.mxu0 0.0
    %139 = vmatpush1.xpose.msra.mxu0 0.0
    %140 = vmatprep.subr.mxu0 0.0
    %141 = vmatpush1.xpose.msra.mxu0 0.0
    %142 = vmatprep.subr.mxu0 0.0
    %143 = vmatpush1.xpose.msra.mxu0 0.0
    %144 = vmatprep.subr.mxu0 0.0
    %145 = vmatpush1.xpose.msra.mxu0 0.0
    %146 = vmatprep.subr.mxu0 0.0
    %147 = vmatpush1.xpose.msra.mxu0 0.0
    %148 = vmatprep.subr.mxu0 0.0
    %149 = vmatpush1.xpose.msra.mxu0 0.0
    %150 = vmatprep.subr.mxu0 0.0
    %151 = vmatpush1.xpose.msra.mxu0 0.0
    %152 = vmatprep.subr.mxu0 0.0
    %153 = vmatpush1.xpose.msra.mxu0 0.0
    %154 = vmatprep.subr.mxu0 0.0
    %155 = vmatpush1.xpose.msra.mxu0 0.0
    %156 = vmatprep.subr.mxu0 0.0
    %157 = vmatpush1.xpose.msra.mxu0 0.0
    %158 = vmatprep.subr.mxu0 0.0
    %159 = vmatpush1.xpose.msra.mxu0 0.0
    %160 = vmatprep.subr.mxu0 0.0
    %161 = vmatpush1.xpose.msra.mxu0 0.0
    %162 = vmatprep.subr.mxu0 0.0
    %163 = vmatpush1.xpose.msra.mxu0 0.0
    %164 = vmatprep.subr.mxu0 0.0
    %165 = vmatpush1.xpose.msra.mxu0 0.0
    %166 = vmatprep.subr.mxu0 0.0
    %167 = vmatpush1.xpose.msra.mxu0 0.0
    %168 = vmatprep.subr.mxu0 0.0
    %169 = vmatpush1.xpose.msra.mxu0 0.0
    %170 = vmatprep.mubr.f32.mxu0 %v39
    %171 = vmatmul.mubr.f32.gmra.mrb[0].mxu0 %v38
    %v172 = vpop.f32.mrb[0].mxu0
    %v173 = vadd.f32 0.0, %v172
    %v174 = vpop.f32.mrb[0].mxu0
    %175 = vdwg.mxu0
    %176 = vmatprep.subr.mxu0 %v45
    %177 = vmatpush1.xpose.msra.mxu0 %v44
    %178 = vmatprep.subr.mxu0 %v49
    %179 = vmatpush1.xpose.msra.mxu0 %v48
    %180 = vmatprep.subr.mxu0 %v53
    %181 = vmatpush1.xpose.msra.mxu0 %v52
    %182 = vmatprep.subr.mxu0 %v57
    %183 = vmatpush1.xpose.msra.mxu0 %v56
    %184 = vmatprep.subr.mxu0 %v61
    %185 = vmatpush1.xpose.msra.mxu0 %v60
    %186 = vmatprep.subr.mxu0 %v65
    %187 = vmatpush1.xpose.msra.mxu0 %v64
    %188 = vmatprep.subr.mxu0 %v69
    %189 = vmatpush1.xpose.msra.mxu0 %v68
    %190 = vmatprep.subr.mxu0 %v73
    %191 = vmatpush1.xpose.msra.mxu0 %v72
    %192 = vmatprep.subr.mxu0 %v77
    %193 = vmatpush1.xpose.msra.mxu0 %v76
    %194 = vmatprep.subr.mxu0 %v81
    %195 = vmatpush1.xpose.msra.mxu0 %v80
    %196 = vmatprep.subr.mxu0 %v85
    %197 = vmatpush1.xpose.msra.mxu0 %v84
    %198 = vmatprep.subr.mxu0 %v89
    %199 = vmatpush1.xpose.msra.mxu0 %v88
    %200 = vmatprep.subr.mxu0 %v93
    %201 = vmatpush1.xpose.msra.mxu0 %v92
    %202 = vmatprep.subr.mxu0 %v97
    %203 = vmatpush1.xpose.msra.mxu0 %v96
    %204 = vmatprep.subr.mxu0 %v101
    %205 = vmatpush1.xpose.msra.mxu0 %v100
    %206 = vmatprep.subr.mxu0 %v105
    %207 = vmatpush1.xpose.msra.mxu0 %v104
    %208 = vmatprep.subr.mxu0 0.0
    %209 = vmatpush1.xpose.msra.mxu0 0.0
    %210 = vmatprep.subr.mxu0 0.0
    %211 = vmatpush1.xpose.msra.mxu0 0.0
    %212 = vmatprep.subr.mxu0 0.0
    %213 = vmatpush1.xpose.msra.mxu0 0.0
    %214 = vmatprep.subr.mxu0 0.0
    %215 = vmatpush1.xpose.msra.mxu0 0.0
    %216 = vmatprep.subr.mxu0 0.0
    %217 = vmatpush1.xpose.msra.mxu0 0.0
    %218 = vmatprep.subr.mxu0 0.0
    %219 = vmatpush1.xpose.msra.mxu0 0.0
    %220 = vmatprep.subr.mxu0 0.0
    %221 = vmatpush1.xpose.msra.mxu0 0.0
    %222 = vmatprep.subr.mxu0 0.0
    %223 = vmatpush1.xpose.msra.mxu0 0.0
    %224 = vmatprep.subr.mxu0 0.0
    %225 = vmatpush1.xpose.msra.mxu0 0.0
    %226 = vmatprep.subr.mxu0 0.0
    %227 = vmatpush1.xpose.msra.mxu0 0.0
    %228 = vmatprep.subr.mxu0 0.0
    %229 = vmatpush1.xpose.msra.mxu0 0.0
    %230 = vmatprep.subr.mxu0 0.0
    %231 = vmatpush1.xpose.msra.mxu0 0.0
    %232 = vmatprep.subr.mxu0 0.0
    %233 = vmatpush1.xpose.msra.mxu0 0.0
    %234 = vmatprep.subr.mxu0 0.0
    %235 = vmatpush1.xpose.msra.mxu0 0.0
    %236 = vmatprep.subr.mxu0 0.0
    %237 = vmatpush1.xpose.msra.mxu0 0.0
    %238 = vmatprep.subr.mxu0 0.0
    %239 = vmatpush1.xpose.msra.mxu0 0.0
    %240 = vmatprep.mubr.f32.mxu0 %v41
    %241 = vmatmul.mubr.f32.gmra.mrb[0].mxu0 %v40
    %v242 = vpop.f32.mrb[0].mxu0
    %v243 = vadd.f32 %v173, %v242
    %v244 = vpop.f32.mrb[0].mxu0
    %245 = vdwg.mxu0
    %246 = vst [vmem:[#allocation7] sm:$0xff] %v243
    // Predicated region
    $region18: #{tpu_custom_call.1} parent=1 // pred_check
      _
    $region19: #{tpu_custom_call.1} parent=1 // pred_check_branch
      %248 = sbr.rel (0) target = $region21
    $region20: #{tpu_custom_call.1} parent=1 // pred_region
      %s250 = ssub.s32 128, 128
      %251 = vsyncadd [#allocation4], %s250
      %s253 = sshll.u32 [#allocation7], 4
      %s254 = int_to_ptr.vmem [resolvable:$true] %s253
      %256 = dma.vmem_to_hbm [thread:$0]  %s254, 128, %s2, [#allocation4]
    $region21: #{tpu_custom_call.1} parent=1 // pred_fallthru
      _
    // Predicated region
    $region22: #{tpu_custom_call.1} parent=1 // pred_check
      _
    $region23: #{tpu_custom_call.1} parent=1 // pred_check_branch
      %258 = sbr.rel (0) target = $region25
    $region24: #{tpu_custom_call.1} parent=1 // pred_region
      %259 = dma.done [#allocation4], 128
    $region25: #{tpu_custom_call.1} parent=1 // pred_fallthru
      _
    %260 = vsyncpa [#allocation3], 1
    %261 = vsyncpa [#allocation6], 1
    %262 = vsyncpa [#allocation4], 1

</llo_original>
